<compile_context>
chip_gen: v7x
topology: tpu7x:2x2x1
jax: 0.10.0
libtpu: 0.0.40
codegen_flags: <defaults>
</compile_context>

<pallas_src>
import functools

import jax
import jax.numpy as jnp
from jax.experimental import pallas as pl
from jax.experimental.pallas import tpu as pltpu


# --------------------------- in-kernel SiLU (EUP path) ---------------------------
def _silu(x):
    # exp + approximate reciprocal both live in the EUP slot (idle otherwise).
    return x * pl.reciprocal(1.0 + jnp.exp(-x), approx=True)


# --------------------------- fused kernel ---------------------------
def _bottleneck_kernel(x_ref, w1_ref, b1_ref, w2_ref, b2_ref, m_ref, o_ref,
                       *, W, P, use_shortcut):
    """One grid step = Nb images packed along the sublane axis.

    x_ref : (Nb*Cin, P)        lane-dense input, P = H*W on the 128-lane axis
    w1_ref: (Nb*Ch, Nb*Cin)    block-diagonal 1x1 weights (BN scale folded)
    b1_ref: (Nb*Ch, 1)
    w2_ref: (Nb*Cout, 9*Nb*Ch) block 3x3 weights, col = t*(Nb*Ch) + n*Ch + ci
    b2_ref: (Nb*Cout, 1)
    m_ref : (9, P)             f32 {0,1} per-tap boundary masks (precomputed)
    o_ref : (Nb*Cout, P)
    """
    x = x_ref[...]                                          # (Nb*Cin, P)

    # ---- cv1: 1x1 conv + folded BN + SiLU -- one MXU matmul for the block ----
    h = _silu(jnp.dot(w1_ref[...], x, preferred_element_type=jnp.float32)
              + b1_ref[...])                                # (Nb*Ch, P)

    # ---- cv2: 3x3 SAME conv = 9 rolled taps (XLU) * precomputed masks,
    #      stacked and contracted with a single MXU matmul ----
    masks = m_ref[...]                                      # (9, P)
    taps = []
    for di in range(3):
        for dj in range(3):
            t = di * 3 + dj
            s = (di - 1) * W + (dj - 1)                     # flattened source offset
            tap = h if s == 0 else pltpu.roll(h, shift=(-s) % P, axis=1)
            if t != 4:                                      # center tap never out of bounds
                tap = tap * masks[t:t + 1, :]
            taps.append(tap)
    tapstack = jnp.concatenate(taps, axis=0)                # (9*Nb*Ch, P)

    y = _silu(jnp.dot(w2_ref[...], tapstack, preferred_element_type=jnp.float32)
              + b2_ref[...])                                # (Nb*Cout, P)
    if use_shortcut:
        y = y + x                                           # Cin == Cout (wrapper-checked)
    o_ref[...] = y.astype(o_ref.dtype)


# --------------------------- host-side helpers ---------------------------
def _build_tap_masks(H, W):
    """f32 {0,1} masks, one per 3x3 tap, reproducing zero-padded SAME boundaries."""
    P = H * W
    row = jnp.arange(P, dtype=jnp.int32) // W
    col = jnp.arange(P, dtype=jnp.int32) % W
    masks = []
    for di in range(3):
        for dj in range(3):
            m = jnp.ones((P,), jnp.float32)
            if di == 0:
                m = m * (row >= 1)
            elif di == 2:
                m = m * (row <= H - 2)
            if dj == 0:
                m = m * (col >= 1)
            elif dj == 2:
                m = m * (col <= W - 2)
            masks.append(m)
    return jnp.stack(masks, axis=0)                         # (9, P)


def _pick_images_per_step(N, Cin, Cout, P):
    """Largest divisor Nb of N that keeps grid >= 2 (v7x: both TCs busy),
    keeps the partial-block sublane dims 8-aligned, and stays tiny in VMEM."""
    best = None
    for nb in range(1, N + 1):
        if N % nb:
            continue
        grid = N // nb
        if grid > 1 and ((nb * Cin) % 8 or (nb * Cout) % 8):
            continue                                        # (8, .) rule for partial blocks
        if N >= 2 and grid < 2:
            continue                                        # keep both v7x TCs fed
        if 2 * nb * (Cin + Cout) * P * 4 > (4 << 20):
            continue                                        # double-buffered x+out budget
        best = nb
    return best if best is not None else N


def prepare_kernel_params(folded, Nb):
    """Repack folded (BN-into-conv) params into the packed block layouts."""
    w1f, b1f, w2f, b2f = folded
    Ch, _Cin = w1f.shape
    Cout = w2f.shape[0]
    eye = jnp.eye(Nb, dtype=jnp.float32)
    # cv1: block-diagonal so the Nb packed images stay independent.
    w1k = jnp.kron(eye, w1f)                                # (Nb*Ch, Nb*Cin)
    b1k = jnp.tile(b1f.reshape(Ch, 1), (Nb, 1))             # (Nb*Ch, 1)
    # cv2: OIHW -> (Cout, t, ci), then block over images.
    w2_tap = jnp.transpose(w2f, (0, 2, 3, 1)).reshape(Cout, 9, Ch)
    # W2[(n,co), (t, n', ci)] = w2_tap[co, t, ci] * (n == n')
    w2k = jnp.einsum('nm,ctk->nctmk', eye, w2_tap).reshape(Nb * Cout, 9 * Nb * Ch)
    b2k = jnp.tile(b2f.reshape(Cout, 1), (Nb, 1))           # (Nb*Cout, 1)
    return w1k, b1k, w2k, b2k


# --------------------------- module forward (Pallas path) ---------------------------
def bottleneck_forward(x_nchw, folded, use_shortcut):
    """x_nchw: (N, C, H, W) f32. folded = BN-folded params from init_bottleneck_params."""
    w1f, _b1f, w2f, _b2f = folded
    N, Cin, H, W = x_nchw.shape
    Cout = w2f.shape[0]
    if use_shortcut and Cin != Cout:
        raise ValueError("shortcut requires in_channels == out_channels")
    P = H * W

    Nb = _pick_images_per_step(N, Cin, Cout, P)
    grid = N // Nb
    w1k, b1k, w2k, b2k = prepare_kernel_params(folded, Nb)
    masks = _build_tap_masks(H, W)

    # Lane-dense layout: (N, C, H, W) -> (N*C, H*W); pure reshape, no transpose.
    x2d = x_nchw.reshape(N * Cin, P)

    kernel = functools.partial(_bottleneck_kernel, W=W, P=P, use_shortcut=use_shortcut)
    out2d = pl.pallas_call(
        kernel,
        out_shape=jax.ShapeDtypeStruct((N * Cout, P), jnp.float32),
        grid_spec=pltpu.PrefetchScalarGridSpec(
            num_scalar_prefetch=0,
            grid=(grid,),
            in_specs=[
                pl.BlockSpec((Nb * Cin, P), lambda n: (n, 0)),
                pl.BlockSpec(w1k.shape, lambda n: (0, 0)),
                pl.BlockSpec(b1k.shape, lambda n: (0, 0)),
                pl.BlockSpec(w2k.shape, lambda n: (0, 0)),
                pl.BlockSpec(b2k.shape, lambda n: (0, 0)),
                pl.BlockSpec(masks.shape, lambda n: (0, 0)),
            ],
            out_specs=pl.BlockSpec((Nb * Cout, P), lambda n: (n, 0)),
        ),
        # NOTE(v7x): blocks here are <100 KiB; when scaling H/W or Nb, re-derive
        # the block size against 64 MiB VMEM and set vmem_limit_bytes explicitly.
        compiler_params=pltpu.CompilerParams(dimension_semantics=("parallel",)),
    )(x2d, w1k, b1k, w2k, b2k, masks)
    return out2d.reshape(N, Cout, H, W)


# --------------------------- parameters (synthetic, deterministic) ---------------------------
def init_bottleneck_params(key, in_channels, out_channels, expansion=0.5, eps=1e-5):
    """Raw Conv+BN params (torch layouts), with BN folded into (weight, bias)."""
    hidden = int(out_channels * expansion)
    k = jax.random.split(key, 10)
    # cv1: 1x1 conv weight, torch (Ch, Cin, 1, 1) stored as (Ch, Cin)
    w1 = 0.1 * jax.random.normal(k[0], (hidden, in_channels), jnp.float32)
    g1 = 1.0 + 0.1 * jax.random.normal(k[1], (hidden,), jnp.float32)
    beta1 = 0.1 * jax.random.normal(k[2], (hidden,), jnp.float32)
    mean1 = 0.1 * jax.random.normal(k[3], (hidden,), jnp.float32)
    var1 = jnp.abs(jax.random.normal(k[4], (hidden,), jnp.float32)) + 0.5
    s1 = g1 / jnp.sqrt(var1 + eps)
    w1f = w1 * s1[:, None]                                  # BN scale folded
    b1f = beta1 - mean1 * s1
    # cv2: 3x3 conv weight, torch OIHW (Cout, Ch, 3, 3)
    w2 = 0.1 * jax.random.normal(k[5], (out_channels, hidden, 3, 3), jnp.float32)
    g2 = 1.0 + 0.1 * jax.random.normal(k[6], (out_channels,), jnp.float32)
    beta2 = 0.1 * jax.random.normal(k[7], (out_channels,), jnp.float32)
    mean2 = 0.1 * jax.random.normal(k[8], (out_channels,), jnp.float32)
    var2 = jnp.abs(jax.random.normal(k[9], (out_channels,), jnp.float32)) + 0.5
    s2 = g2 / jnp.sqrt(var2 + eps)
    w2f = w2 * s2[:, None, None, None]                      # BN scale folded
    b2f = beta2 - mean2 * s2
    return (w1f, b1f, w2f, b2f)


# --------------------------- pure-JAX reference ---------------------------
def _silu_ref(x):
    return x * jax.nn.sigmoid(x)


def ref_forward(x_nchw, folded, use_shortcut):
    w1f, b1f, w2f, b2f = folded
    Ch, Cin = w1f.shape
    dn = ("NCHW", "OIHW", "NCHW")
    h = jax.lax.conv_general_dilated(x_nchw, w1f.reshape(Ch, Cin, 1, 1),
                                     (1, 1), "SAME", dimension_numbers=dn)
    h = _silu_ref(h + b1f.reshape(1, Ch, 1, 1))
    y = jax.lax.conv_general_dilated(h, w2f, (1, 1), "SAME", dimension_numbers=dn)
    y = _silu_ref(y + b2f.reshape(1, -1, 1, 1))
    if use_shortcut:
        y = y + x_nchw
    return y


if __name__ == "__main__":
    key = jax.random.PRNGKey(0)
    kx, kp = jax.random.split(key)
    # N=4 -> Nb=2 images per grid step, grid=(2,) so both v7x TCs get work,
    # and the packed hidden tile (2*Ch, P) = (8, P) fills all f32 sublanes.
    N, C, H, W = 4, 8, 16, 16                               # in == out -> shortcut active
    x = jax.random.normal(kx, (N, C, H, W), jnp.float32)
    folded = init_bottleneck_params(kp, C, C, expansion=0.5)
    use_shortcut = True

    out = bottleneck_forward(x, folded, use_shortcut)
    out = jax.block_until_ready(out)

    ref = ref_forward(x, folded, use_shortcut)
    max_err = float(jnp.max(jnp.abs(out - ref)))
    assert out.shape == (N, C, H, W)
    # Tolerance relaxed vs. 1e-4 because SiLU uses the EUP approximate reciprocal.
    assert max_err < 5e-3, f"max_err={max_err}"
    print("KERNEL_OK")
</pallas_src>

<mosaic_0001>
module attributes {stable_mosaic.version = 11 : i64} {
  func.func @_bottleneck_kernel(%arg0: i32, %arg1: memref<16x256xf32, #tpu.memory_space<vmem>>, %arg2: memref<8x16xf32, #tpu.memory_space<vmem>>, %arg3: memref<8x1xf32, #tpu.memory_space<vmem>>, %arg4: memref<16x72xf32, #tpu.memory_space<vmem>>, %arg5: memref<16x1xf32, #tpu.memory_space<vmem>>, %arg6: memref<9x256xf32, #tpu.memory_space<vmem>>, %arg7: memref<16x256xf32, #tpu.memory_space<vmem>>) attributes {dimension_semantics = [#tpu.dimension_semantics<parallel>], iteration_bounds = array<i64: 2>, scalar_prefetch = 0 : i64, scratch_operands = 0 : i64, tpu.core_type = #tpu.core_type<tc>, window_params = [{transform_indices = @transform_0, window_bounds = array<i64: 16, 256>}, {pipeline_mode = #tpu.pipeline_mode<synchronous>, transform_indices = @transform_1, window_bounds = array<i64: 8, 16>}, {pipeline_mode = #tpu.pipeline_mode<synchronous>, transform_indices = @transform_2, window_bounds = array<i64: 8, 1>}, {pipeline_mode = #tpu.pipeline_mode<synchronous>, transform_indices = @transform_3, window_bounds = array<i64: 16, 72>}, {pipeline_mode = #tpu.pipeline_mode<synchronous>, transform_indices = @transform_4, window_bounds = array<i64: 16, 1>}, {pipeline_mode = #tpu.pipeline_mode<synchronous>, transform_indices = @transform_5, window_bounds = array<i64: 9, 256>}, {transform_indices = @transform_6, window_bounds = array<i64: 16, 256>}]} {
    %c0 = arith.constant 0 : index
    %c0_0 = arith.constant 0 : index
    %0 = vector.load %arg1[%c0, %c0_0] : memref<16x256xf32, #tpu.memory_space<vmem>>, vector<16x256xf32>
    %c0_1 = arith.constant 0 : index
    %c0_2 = arith.constant 0 : index
    %1 = vector.load %arg2[%c0_1, %c0_2] : memref<8x16xf32, #tpu.memory_space<vmem>>, vector<8x16xf32>
    %cst = arith.constant dense<0.000000e+00> : vector<8x256xf32>
    %2 = tpu.matmul %1, %0, %cst {dimension_numbers = #tpu.dot_dimension_numbers<[1], [0], [0], [1], [0, 0, 1, 1], [], []>} : vector<8x16xf32>, vector<16x256xf32>, vector<8x256xf32> -> vector<8x256xf32>
    %c0_3 = arith.constant 0 : index
    %c0_4 = arith.constant 0 : index
    %3 = vector.load %arg3[%c0_3, %c0_4] : memref<8x1xf32, #tpu.memory_space<vmem>>, vector<8x1xf32>
    %4 = vector.broadcast %3 : vector<8x1xf32> to vector<8x256xf32>
    %5 = arith.addf %2, %4 : vector<8x256xf32>
    %cst_5 = arith.constant 0.000000e+00 : f32
    %6 = vector.broadcast %cst_5 : f32 to vector<8x256xf32>
    %7 = arith.subf %6, %5 : vector<8x256xf32>
    %8 = math.exp %7 : vector<8x256xf32>
    %cst_6 = arith.constant 1.000000e+00 : f32
    %9 = vector.broadcast %cst_6 : f32 to vector<8x256xf32>
    %10 = arith.addf %9, %8 : vector<8x256xf32>
    %11 = tpu.reciprocal %10 {approx = true} : vector<8x256xf32> -> vector<8x256xf32>
    %12 = arith.mulf %5, %11 : vector<8x256xf32>
    %c0_7 = arith.constant 0 : index
    %c0_8 = arith.constant 0 : index
    %13 = vector.load %arg6[%c0_7, %c0_8] : memref<9x256xf32, #tpu.memory_space<vmem>>, vector<9x256xf32>
    %c17_i32 = arith.constant 17 : i32
    %14 = tpu.dynamic_rotate %12 by %c17_i32 dim 1 : vector<8x256xf32>, i32 -> vector<8x256xf32>
    %15 = vector.extract_strided_slice %13 {offsets = [0, 0], sizes = [1, 256], strides = [1, 1]} : vector<9x256xf32> to vector<1x256xf32>
    %16 = vector.broadcast %15 : vector<1x256xf32> to vector<8x256xf32>
    %17 = arith.mulf %14, %16 : vector<8x256xf32>
    %c16_i32 = arith.constant 16 : i32
    %18 = tpu.dynamic_rotate %12 by %c16_i32 dim 1 : vector<8x256xf32>, i32 -> vector<8x256xf32>
    %19 = vector.extract_strided_slice %13 {offsets = [1, 0], sizes = [1, 256], strides = [1, 1]} : vector<9x256xf32> to vector<1x256xf32>
    %20 = vector.broadcast %19 : vector<1x256xf32> to vector<8x256xf32>
    %21 = arith.mulf %18, %20 : vector<8x256xf32>
    %c15_i32 = arith.constant 15 : i32
    %22 = tpu.dynamic_rotate %12 by %c15_i32 dim 1 : vector<8x256xf32>, i32 -> vector<8x256xf32>
    %23 = vector.extract_strided_slice %13 {offsets = [2, 0], sizes = [1, 256], strides = [1, 1]} : vector<9x256xf32> to vector<1x256xf32>
    %24 = vector.broadcast %23 : vector<1x256xf32> to vector<8x256xf32>
    %25 = arith.mulf %22, %24 : vector<8x256xf32>
    %c1_i32 = arith.constant 1 : i32
    %26 = tpu.dynamic_rotate %12 by %c1_i32 dim 1 : vector<8x256xf32>, i32 -> vector<8x256xf32>
    %27 = vector.extract_strided_slice %13 {offsets = [3, 0], sizes = [1, 256], strides = [1, 1]} : vector<9x256xf32> to vector<1x256xf32>
    %28 = vector.broadcast %27 : vector<1x256xf32> to vector<8x256xf32>
    %29 = arith.mulf %26, %28 : vector<8x256xf32>
    %c255_i32 = arith.constant 255 : i32
    %30 = tpu.dynamic_rotate %12 by %c255_i32 dim 1 : vector<8x256xf32>, i32 -> vector<8x256xf32>
    %31 = vector.extract_strided_slice %13 {offsets = [5, 0], sizes = [1, 256], strides = [1, 1]} : vector<9x256xf32> to vector<1x256xf32>
    %32 = vector.broadcast %31 : vector<1x256xf32> to vector<8x256xf32>
    %33 = arith.mulf %30, %32 : vector<8x256xf32>
    %c241_i32 = arith.constant 241 : i32
    %34 = tpu.dynamic_rotate %12 by %c241_i32 dim 1 : vector<8x256xf32>, i32 -> vector<8x256xf32>
    %35 = vector.extract_strided_slice %13 {offsets = [6, 0], sizes = [1, 256], strides = [1, 1]} : vector<9x256xf32> to vector<1x256xf32>
    %36 = vector.broadcast %35 : vector<1x256xf32> to vector<8x256xf32>
    %37 = arith.mulf %34, %36 : vector<8x256xf32>
    %c240_i32 = arith.constant 240 : i32
    %38 = tpu.dynamic_rotate %12 by %c240_i32 dim 1 : vector<8x256xf32>, i32 -> vector<8x256xf32>
    %39 = vector.extract_strided_slice %13 {offsets = [7, 0], sizes = [1, 256], strides = [1, 1]} : vector<9x256xf32> to vector<1x256xf32>
    %40 = vector.broadcast %39 : vector<1x256xf32> to vector<8x256xf32>
    %41 = arith.mulf %38, %40 : vector<8x256xf32>
    %c239_i32 = arith.constant 239 : i32
    %42 = tpu.dynamic_rotate %12 by %c239_i32 dim 1 : vector<8x256xf32>, i32 -> vector<8x256xf32>
    %43 = vector.extract_strided_slice %13 {offsets = [8, 0], sizes = [1, 256], strides = [1, 1]} : vector<9x256xf32> to vector<1x256xf32>
    %44 = vector.broadcast %43 : vector<1x256xf32> to vector<8x256xf32>
    %45 = arith.mulf %42, %44 : vector<8x256xf32>
    %46 = tpu.concatenate %17, %21, %25, %29, %12, %33, %37, %41, %45 in 0 : vector<8x256xf32>, vector<8x256xf32>, vector<8x256xf32>, vector<8x256xf32>, vector<8x256xf32>, vector<8x256xf32>, vector<8x256xf32>, vector<8x256xf32>, vector<8x256xf32> -> vector<72x256xf32>
    %c0_9 = arith.constant 0 : index
    %c0_10 = arith.constant 0 : index
    %47 = vector.load %arg4[%c0_9, %c0_10] : memref<16x72xf32, #tpu.memory_space<vmem>>, vector<16x72xf32>
    %cst_11 = arith.constant dense<0.000000e+00> : vector<16x256xf32>
    %48 = tpu.matmul %47, %46, %cst_11 {dimension_numbers = #tpu.dot_dimension_numbers<[1], [0], [0], [1], [0, 0, 1, 1], [], []>} : vector<16x72xf32>, vector<72x256xf32>, vector<16x256xf32> -> vector<16x256xf32>
    %c0_12 = arith.constant 0 : index
    %c0_13 = arith.constant 0 : index
    %49 = vector.load %arg5[%c0_12, %c0_13] : memref<16x1xf32, #tpu.memory_space<vmem>>, vector<16x1xf32>
    %50 = vector.broadcast %49 : vector<16x1xf32> to vector<16x256xf32>
    %51 = arith.addf %48, %50 : vector<16x256xf32>
    %cst_14 = arith.constant 0.000000e+00 : f32
    %52 = vector.broadcast %cst_14 : f32 to vector<16x256xf32>
    %53 = arith.subf %52, %51 : vector<16x256xf32>
    %54 = math.exp %53 : vector<16x256xf32>
    %cst_15 = arith.constant 1.000000e+00 : f32
    %55 = vector.broadcast %cst_15 : f32 to vector<16x256xf32>
    %56 = arith.addf %55, %54 : vector<16x256xf32>
    %57 = tpu.reciprocal %56 {approx = true} : vector<16x256xf32> -> vector<16x256xf32>
    %58 = arith.mulf %51, %57 : vector<16x256xf32>
    %59 = arith.addf %58, %0 : vector<16x256xf32>
    %c0_16 = arith.constant 0 : index
    %c0_17 = arith.constant 0 : index
    %60 = vector.load %arg7[%c0_16, %c0_17] : memref<16x256xf32, #tpu.memory_space<vmem>>, vector<16x256xf32>
    tpu.vector_store %arg7[%c0_16, %c0_17], %59 {strides = array<i32>} : memref<16x256xf32, #tpu.memory_space<vmem>>, vector<16x256xf32>,
    return
  }
  func.func @transform_0(%arg0: i32) -> (i32, i32) {
    %c0_i32 = arith.constant 0 : i32
    %c0_i32_0 = arith.constant 0 : i32
    return %arg0, %c0_i32 : i32, i32
  }
  func.func @transform_1(%arg0: i32) -> (i32, i32) {
    %c0_i32 = arith.constant 0 : i32
    %c0_i32_0 = arith.constant 0 : i32
    %c0_i32_1 = arith.constant 0 : i32
    return %c0_i32, %c0_i32_0 : i32, i32
  }
  func.func @transform_2(%arg0: i32) -> (i32, i32) {
    %c0_i32 = arith.constant 0 : i32
    %c0_i32_0 = arith.constant 0 : i32
    %c0_i32_1 = arith.constant 0 : i32
    return %c0_i32, %c0_i32_0 : i32, i32
  }
  func.func @transform_3(%arg0: i32) -> (i32, i32) {
    %c0_i32 = arith.constant 0 : i32
    %c0_i32_0 = arith.constant 0 : i32
    %c0_i32_1 = arith.constant 0 : i32
    return %c0_i32, %c0_i32_0 : i32, i32
  }
  func.func @transform_4(%arg0: i32) -> (i32, i32) {
    %c0_i32 = arith.constant 0 : i32
    %c0_i32_0 = arith.constant 0 : i32
    %c0_i32_1 = arith.constant 0 : i32
    return %c0_i32, %c0_i32_0 : i32, i32
  }
  func.func @transform_5(%arg0: i32) -> (i32, i32) {
    %c0_i32 = arith.constant 0 : i32
    %c0_i32_0 = arith.constant 0 : i32
    %c0_i32_1 = arith.constant 0 : i32
    return %c0_i32, %c0_i32_0 : i32, i32
  }
  func.func @transform_6(%arg0: i32) -> (i32, i32) {
    %c0_i32 = arith.constant 0 : i32
    %c0_i32_0 = arith.constant 0 : i32
    return %arg0, %c0_i32 : i32, i32
  }
}

</mosaic_0001>

<llo_original>
// kernel: tpu_custom_call.1
$region0: #{tpu_custom_call.1}
  #allocation0 [shape = 'u32[]', space=smem, size = 0x4, offset = 0x4, fixed_abs, tag = 'smem constant byte address 0x4 - core index']
  #allocation1 [shape = 'u32[144,128]{1,0:T(1,128)}', space=vmem, size = 0x12000, scoped, tag = 'internal scratch']
  %s0 = inlined_call_operand.hbm [shape: f32[32,256], index: 0, kind: input, shape index: {}]
  %s1 = inlined_call_operand.vmem [shape: f32[8,16], index: 1, kind: input, shape index: {}]
  %s2 = inlined_call_operand.vmem [shape: f32[8,1], index: 2, kind: input, shape index: {}]
  %s3 = inlined_call_operand.hbm [shape: f32[16,72], index: 3, kind: input, shape index: {}]
  %s4 = inlined_call_operand.vmem [shape: f32[16,1], index: 4, kind: input, shape index: {}]
  %s5 = inlined_call_operand.vmem [shape: f32[9,256], index: 5, kind: input, shape index: {}]
  %s6 = inlined_call_operand.hbm [shape: f32[32,256], index: 6, kind: output, shape index: {}]
  %s7 = sld [smem:[#allocation0]]
  $region65: #{tpu_custom_call.1} parent=0
    _
  %s9 = ssub.s32 1, %s7
  %s10 = scalar_select 0, %s9, %s7
  $region1: #{tpu_custom_call.1} parent=0
    #allocation2 [shape = 'u8[32768]{0}', space=vmem, size = 0x8000, scoped, tag = 'input window, operand 0']
    #allocation3 [shape = 's32[2]{0}', space=sflag, size = 0x8, scoped, tag = 'scoped memory for tpu_custom_call.1']
    #allocation4 [shape = 's32[2]{0}', space=sflag, size = 0x8, scoped, tag = 'scoped memory for tpu_custom_call.1']
    #allocation5 [shape = 'u8[8192]{0}', space=vmem, size = 0x2000, scoped, tag = 'input window, operand 3, single buffered']
    #allocation6 [shape = 's32[1]{0}', space=sflag, size = 0x4, scoped, tag = 'scoped memory for tpu_custom_call.1']
    #allocation7 [shape = 'u8[32768]{0}', space=vmem, size = 0x8000, scoped, tag = 'output window, operand 0']
    %11 = vsyncpa [#allocation3], 0
    %s12 = scalar_lea.sflag [#allocation3], 1
    %13 = vsyncpa %s12, 0
    %14 = vsyncpa [#allocation6], 0
    %15 = vsyncpa [#allocation4], 0
    %s16 = scalar_lea.sflag [#allocation4], 1
    %17 = vsyncpa %s16, 0
    loop: start=0, step=1, limit=4
    $region2: #{tpu_custom_call.1} parent=1 // loop_pre_header
      _
    $region3: #{tpu_custom_call.1} parent=1 // loop_header
      %s19 = sphi 0, %s23
      %p20 = scmp.ge.s32.totalorder %s19, 4
      %s29 = sphi 0, %s31
      %s32 = sphi 0, %s29
      %s33 = sphi 0, %s32
      %s49 = sphi 0, %s33
      %s53 = sphi 0, %s53
      %s55 = sphi 0, %s53
      %s56 = sphi 0, %s55
      %s70 = sphi 0, %s56
      %s74 = sphi 0, %s74
      %s76 = sphi 0, %s74
      %s77 = sphi 0, %s76
      %s91 = sphi 0, %s77
      %s95 = sphi 0, %s95
      %s97 = sphi 0, %s95
      %s98 = sphi 0, %s97
      %s112 = sphi 0, %s98
      %s116 = sphi 0, %s116
      %s118 = sphi 0, %s116
      %s119 = sphi 0, %s118
      %s133 = sphi 0, %s119
      %s137 = sphi 0, %s137
      %s139 = sphi 0, %s137
      %s140 = sphi 0, %s139
      %s154 = sphi 0, %s140
      %s160 = sphi 0, %s162
      %s163 = sphi 0, %s160
      %s164 = sphi 0, %s163
      %s180 = sphi 0, %s164
    $region4: #{tpu_custom_call.1} parent=1 // loop_header_branch
      %22 = sbr.rel (%p20) target = $region8
    $region5: #{tpu_custom_call.1} parent=1 // loop_body
      %s24 = ssub.s32 %s19, 1
      %s25 = ssub.s32 %s19, 2
      %s26 = sadd.s32 %s19, 1
      %s27 = ssub.s32 %s19, %s26
      %p28 = scmp.eq.s32.totalorder %s27, 0
      %s30 = sadd.s32 %s29, 1
      %s31 = scalar_select %p28, %s29, %s30
      %p34 = pneg %p28
      %p35 = scmp.eq.s32.totalorder %s19, 1
      %p36 = por %p34, %p35
      %p37 = scmp.ne.s32.totalorder %s29, %s32
      %p38 = scmp.eq.s32.totalorder %s19, 0
      %p39 = por %p37, %p38
      %p40 = scmp.ne.s32.totalorder %s29, %s32
      %p41 = scmp.eq.s32.totalorder %s24, 1
      %p42 = por %p40, %p41
      %p43 = scmp.ne.s32.totalorder %s32, %s33
      %p44 = scmp.eq.s32.totalorder %s24, 0
      %p45 = por %p43, %p44
      %p46 = scmp.ne.s32.totalorder %s32, %s33
      %p47 = scmp.eq.s32.totalorder %s25, 1
      %p48 = por %p46, %p47
      %p50 = scmp.ne.s32.totalorder %s33, %s49
      %p51 = scmp.eq.s32.totalorder %s25, 0
      %p52 = por %p50, %p51
      %s54 = sadd.s32 %s53, 1
      %p57 = scmp.eq.s32.totalorder %s19, 1
      %p58 = scmp.ne.s32.totalorder %s53, %s55
      %p59 = scmp.eq.s32.totalorder %s19, 0
      %p60 = por %p58, %p59
      %p61 = scmp.ne.s32.totalorder %s53, %s55
      %p62 = scmp.eq.s32.totalorder %s24, 1
      %p63 = por %p61, %p62
      %p64 = scmp.ne.s32.totalorder %s55, %s56
      %p65 = scmp.eq.s32.totalorder %s24, 0
      %p66 = por %p64, %p65
      %p67 = scmp.ne.s32.totalorder %s55, %s56
      %p68 = scmp.eq.s32.totalorder %s25, 1
      %p69 = por %p67, %p68
      %p71 = scmp.ne.s32.totalorder %s56, %s70
      %p72 = scmp.eq.s32.totalorder %s25, 0
      %p73 = por %p71, %p72
      %s75 = sadd.s32 %s74, 1
      %p78 = scmp.eq.s32.totalorder %s19, 1
      %p79 = scmp.ne.s32.totalorder %s74, %s76
      %p80 = scmp.eq.s32.totalorder %s19, 0
      %p81 = por %p79, %p80
      %p82 = scmp.ne.s32.totalorder %s74, %s76
      %p83 = scmp.eq.s32.totalorder %s24, 1
      %p84 = por %p82, %p83
      %p85 = scmp.ne.s32.totalorder %s76, %s77
      %p86 = scmp.eq.s32.totalorder %s24, 0
      %p87 = por %p85, %p86
      %p88 = scmp.ne.s32.totalorder %s76, %s77
      %p89 = scmp.eq.s32.totalorder %s25, 1
      %p90 = por %p88, %p89
      %p92 = scmp.ne.s32.totalorder %s77, %s91
      %p93 = scmp.eq.s32.totalorder %s25, 0
      %p94 = por %p92, %p93
      %s96 = sadd.s32 %s95, 1
      %p99 = scmp.eq.s32.totalorder %s19, 1
      %p100 = scmp.ne.s32.totalorder %s95, %s97
      %p101 = scmp.eq.s32.totalorder %s19, 0
      %p102 = por %p100, %p101
      %p103 = scmp.ne.s32.totalorder %s95, %s97
      %p104 = scmp.eq.s32.totalorder %s24, 1
      %p105 = por %p103, %p104
      %p106 = scmp.ne.s32.totalorder %s97, %s98
      %p107 = scmp.eq.s32.totalorder %s24, 0
      %p108 = por %p106, %p107
      %p109 = scmp.ne.s32.totalorder %s97, %s98
      %p110 = scmp.eq.s32.totalorder %s25, 1
      %p111 = por %p109, %p110
      %p113 = scmp.ne.s32.totalorder %s98, %s112
      %p114 = scmp.eq.s32.totalorder %s25, 0
      %p115 = por %p113, %p114
      %s117 = sadd.s32 %s116, 1
      %p120 = scmp.eq.s32.totalorder %s19, 1
      %p121 = scmp.ne.s32.totalorder %s116, %s118
      %p122 = scmp.eq.s32.totalorder %s19, 0
      %p123 = por %p121, %p122
      %p124 = scmp.ne.s32.totalorder %s116, %s118
      %p125 = scmp.eq.s32.totalorder %s24, 1
      %p126 = por %p124, %p125
      %p127 = scmp.ne.s32.totalorder %s118, %s119
      %p128 = scmp.eq.s32.totalorder %s24, 0
      %p129 = por %p127, %p128
      %p130 = scmp.ne.s32.totalorder %s118, %s119
      %p131 = scmp.eq.s32.totalorder %s25, 1
      %p132 = por %p130, %p131
      %p134 = scmp.ne.s32.totalorder %s119, %s133
      %p135 = scmp.eq.s32.totalorder %s25, 0
      %p136 = por %p134, %p135
      %s138 = sadd.s32 %s137, 1
      %p141 = scmp.eq.s32.totalorder %s19, 1
      %p142 = scmp.ne.s32.totalorder %s137, %s139
      %p143 = scmp.eq.s32.totalorder %s19, 0
      %p144 = por %p142, %p143
      %p145 = scmp.ne.s32.totalorder %s137, %s139
      %p146 = scmp.eq.s32.totalorder %s24, 1
      %p147 = por %p145, %p146
      %p148 = scmp.ne.s32.totalorder %s139, %s140
      %p149 = scmp.eq.s32.totalorder %s24, 0
      %p150 = por %p148, %p149
      %p151 = scmp.ne.s32.totalorder %s139, %s140
      %p152 = scmp.eq.s32.totalorder %s25, 1
      %p153 = por %p151, %p152
      %p155 = scmp.ne.s32.totalorder %s140, %s154
      %p156 = scmp.eq.s32.totalorder %s25, 0
      %p157 = por %p155, %p156
      %s158 = ssub.s32 %s19, %s26
      %p159 = scmp.eq.s32.totalorder %s158, 0
      %s161 = sadd.s32 %s160, 1
      %s162 = scalar_select %p159, %s160, %s161
      %p165 = pneg %p159
      %p166 = scmp.eq.s32.totalorder %s19, 1
      %p167 = por %p165, %p166
      %p168 = scmp.ne.s32.totalorder %s160, %s163
      %p169 = scmp.eq.s32.totalorder %s19, 0
      %p170 = por %p168, %p169
      %p171 = scmp.ne.s32.totalorder %s160, %s163
      %p172 = scmp.eq.s32.totalorder %s24, 1
      %p173 = por %p171, %p172
      %p174 = scmp.ne.s32.totalorder %s163, %s164
      %p175 = scmp.eq.s32.totalorder %s24, 0
      %p176 = por %p174, %p175
      %p177 = scmp.ne.s32.totalorder %s163, %s164
      %p178 = scmp.eq.s32.totalorder %s25, 1
      %p179 = por %p177, %p178
      %p181 = scmp.ne.s32.totalorder %s164, %s180
      %p182 = scmp.eq.s32.totalorder %s25, 0
      %p183 = por %p181, %p182
      %p184 = scmp.le.s32.totalorder 1, %s19
      %p185 = scmp.lt.s32.totalorder %s19, 3
      %p186 = pnand %p184, %p185
      %p187 = pneg %p186
      // Predicated region
      $region9: #{tpu_custom_call.1} parent=5 // pred_check
        _
      $region10: #{tpu_custom_call.1} parent=5 // pred_check_branch
        %189 = sbr.rel (%p186) target = $region12
      $region11: #{tpu_custom_call.1} parent=5 // pred_region
        %s190 = ssub.s32 %s19, 1
        // Predicated region
        $region13: #{tpu_custom_call.1} parent=11 // pred_check
          %p191 = pneg %p66
        $region14: #{tpu_custom_call.1} parent=11 // pred_check_branch
          %193 = sbr.rel (%p191) target = $region16
        $region15: #{tpu_custom_call.1} parent=11 // pred_region
          _
        $region16: #{tpu_custom_call.1} parent=11 // pred_fallthru
          _
        // Predicated region
        $region17: #{tpu_custom_call.1} parent=11 // pred_check
          %p194 = pneg %p87
        $region18: #{tpu_custom_call.1} parent=11 // pred_check_branch
          %196 = sbr.rel (%p194) target = $region20
        $region19: #{tpu_custom_call.1} parent=11 // pred_region
          _
        $region20: #{tpu_custom_call.1} parent=11 // pred_fallthru
          _
        // Predicated region
        $region21: #{tpu_custom_call.1} parent=11 // pred_check
          %p197 = pneg %p108
        $region22: #{tpu_custom_call.1} parent=11 // pred_check_branch
          %199 = sbr.rel (%p197) target = $region24
        $region23: #{tpu_custom_call.1} parent=11 // pred_region
          %s201 = ssub.s32 256, 256
          %202 = vsyncadd [#allocation6], %s201
          %s203 = sshll.u32 [#allocation5], 4
          %s204 = int_to_ptr.vmem [resolvable:$true] %s203
          %209 = dma.hbm_to_vmem [thread:$0]  %s3, 256, %s204, [#allocation6], 128, 128, 8
        $region24: #{tpu_custom_call.1} parent=11 // pred_fallthru
          _
        // Predicated region
        $region25: #{tpu_custom_call.1} parent=11 // pred_check
          %p210 = pneg %p129
        $region26: #{tpu_custom_call.1} parent=11 // pred_check_branch
          %212 = sbr.rel (%p210) target = $region28
        $region27: #{tpu_custom_call.1} parent=11 // pred_region
          _
        $region28: #{tpu_custom_call.1} parent=11 // pred_fallthru
          _
        // Predicated region
        $region29: #{tpu_custom_call.1} parent=11 // pred_check
          %p213 = pneg %p150
        $region30: #{tpu_custom_call.1} parent=11 // pred_check_branch
          %215 = sbr.rel (%p213) target = $region32
        $region31: #{tpu_custom_call.1} parent=11 // pred_region
          _
        $region32: #{tpu_custom_call.1} parent=11 // pred_fallthru
          _
      $region12: #{tpu_custom_call.1} parent=5 // pred_fallthru
        _
      %p216 = scmp.lt.s32.totalorder %s19, 2
      // Predicated region
      $region33: #{tpu_custom_call.1} parent=5 // pred_check
        %p217 = pneg %p216
      $region34: #{tpu_custom_call.1} parent=5 // pred_check_branch
        %219 = sbr.rel (%p217) target = $region36
      $region35: #{tpu_custom_call.1} parent=5 // pred_region
        // Predicated region
        $region37: #{tpu_custom_call.1} parent=35 // pred_check
          %p220 = pneg %p39
        $region38: #{tpu_custom_call.1} parent=35 // pred_check_branch
          %222 = sbr.rel (%p220) target = $region40
        $region39: #{tpu_custom_call.1} parent=35 // pred_region
          %s223 = sand.u32 %s29, 1
          %s224 = scalar_lea.sflag [#allocation3], %s223
          %s225 = sand.u32 %s29, 1
          %s226 = smul.addr %s225, 32
          %s227 = scalar_lea.vmem [#allocation2], %s226
          %s228 = smul.u32 2, %s19
          %s230 = ssub.s32 512, 512
          %231 = vsyncadd %s224, %s230
          %s232 = smul.addr %s228, 2
          %s233 = smul.addr %s232, 128
          %s234 = scalar_lea.hbm %s0, %s233
          %s235 = sshll.u32 %s227, 4
          %s236 = int_to_ptr.vmem [resolvable:$true] %s235
          %241 = dma.hbm_to_vmem [thread:$0]  %s234, 512, %s236, %s224, 256, 256, 16
        $region40: #{tpu_custom_call.1} parent=35 // pred_fallthru
          _
      $region36: #{tpu_custom_call.1} parent=5 // pred_fallthru
        _
      %p242 = scmp.le.s32.totalorder 1, %s19
      %p243 = scmp.lt.s32.totalorder %s19, 3
      %p244 = pnand %p242, %p243
      %p245 = pneg %p244
      // Predicated region
      $region41: #{tpu_custom_call.1} parent=5 // pred_check
        _
      $region42: #{tpu_custom_call.1} parent=5 // pred_check_branch
        %247 = sbr.rel (%p244) target = $region44
      $region43: #{tpu_custom_call.1} parent=5 // pred_region
        %s248 = ssub.s32 %s19, 1
        %s249 = sand.u32 %s32, 1
        %s250 = scalar_lea.sflag [#allocation3], %s249
        %s251 = sand.u32 %s32, 1
        %s252 = smul.addr %s251, 32
        %s253 = scalar_lea.vmem [#allocation2], %s252
        // Predicated region
        $region45: #{tpu_custom_call.1} parent=43 // pred_check
          %p254 = pneg %p45
        $region46: #{tpu_custom_call.1} parent=43 // pred_check_branch
          %256 = sbr.rel (%p254) target = $region48
        $region47: #{tpu_custom_call.1} parent=43 // pred_region
          %257 = dma.done %s250, 512
        $region48: #{tpu_custom_call.1} parent=43 // pred_fallthru
          _
        // Predicated region
        $region49: #{tpu_custom_call.1} parent=43 // pred_check
          %p258 = pneg %p108
        $region50: #{tpu_custom_call.1} parent=43 // pred_check_branch
          %260 = sbr.rel (%p258) target = $region52
        $region51: #{tpu_custom_call.1} parent=43 // pred_region
          %261 = dma.done [#allocation6], 256
        $region52: #{tpu_custom_call.1} parent=43 // pred_fallthru
          _
        %s262 = sand.u32 %s32, 1
        %s263 = scalar_lea.sflag [#allocation3], %s262
        %s264 = sand.u32 %s32, 1
        %s265 = smul.addr %s264, 32
        %s266 = scalar_lea.vmem [#allocation2], %s265
        %p267 = pneg %p45
        %p268 = pneg %p42
        %p269 = pneg %p66
        %p270 = pneg %p63
        %p271 = pneg %p87
        %p272 = pneg %p84
        %p273 = pneg %p108
        %p274 = pneg %p105
        %p275 = pneg %p129
        %p276 = pneg %p126
        %p277 = pneg %p150
        %p278 = pneg %p147
        %p279 = pneg %p176
        %p280 = pneg %p173
        %s281 = sand.u32 %s163, 1
        %s282 = scalar_lea.sflag [#allocation4], %s281
        %s283 = sand.u32 %s163, 1
        %s284 = smul.addr %s283, 32
        %s285 = scalar_lea.vmem [#allocation7], %s284
        %s286 = smul.u32 2, %s24
        %s287 = smul.u32 2, %s24
        %v288 = vld [vmem:[%s253] sm:$0xff]
        %v289 = vld [vmem:[%s253 + $0x8] sm:$0xff]
        %v290 = vld [vmem:[%s253 + $0x10] sm:$0xff]
        %v291 = vld [vmem:[%s253 + $0x18] sm:$0xff]
        %v292 = vld [vmem:[%s1] sm:$0xff]
        %v293 = vld [vmem:[%s2] sm:$0xff]
        %295 = vset.pattern.permute.xlu0 0
        %296 = vperm.xlu0 %295, %v293
        %v297 = vpop.permute.xlu0 %296
        %vm299 = vcmask 130048
        %v301 = vsel %vm299, %v292, 0
        %303 = vmatprep.subr.mxu0 %v289
        %304 = vmatpush1.msra.mxu0 %v288
        %305 = vmatprep.subr.mxu0 %v291
        %306 = vmatpush1.msra.mxu0 %v290
        %307 = vmatprep.subr.mxu0 0.0
        %308 = vmatpush1.msra.mxu0 0.0
        %309 = vmatprep.subr.mxu0 0.0
        %310 = vmatpush1.msra.mxu0 0.0
        %311 = vmatprep.subr.mxu0 0.0
        %312 = vmatpush1.msra.mxu0 0.0
        %313 = vmatprep.subr.mxu0 0.0
        %314 = vmatpush1.msra.mxu0 0.0
        %315 = vmatprep.subr.mxu0 0.0
        %316 = vmatpush1.msra.mxu0 0.0
        %317 = vmatprep.subr.mxu0 0.0
        %318 = vmatpush1.msra.mxu0 0.0
        %319 = vmatprep.subr.mxu0 0.0
        %320 = vmatpush1.msra.mxu0 0.0
        %321 = vmatprep.subr.mxu0 0.0
        %322 = vmatpush1.msra.mxu0 0.0
        %323 = vmatprep.subr.mxu0 0.0
        %324 = vmatpush1.msra.mxu0 0.0
        %325 = vmatprep.subr.mxu0 0.0
        %326 = vmatpush1.msra.mxu0 0.0
        %327 = vmatprep.subr.mxu0 0.0
        %328 = vmatpush1.msra.mxu0 0.0
        %329 = vmatprep.subr.mxu0 0.0
        %330 = vmatpush1.msra.mxu0 0.0
        %331 = vmatprep.subr.mxu0 0.0
        %332 = vmatpush1.msra.mxu0 0.0
        %333 = vmatprep.subr.mxu0 0.0
        %334 = vmatpush1.msra.mxu0 0.0
        %335 = vmatprep.subr.mxu0 0.0
        %336 = vmatpush1.msra.mxu0 0.0
        %337 = vmatprep.subr.mxu0 0.0
        %338 = vmatpush1.msra.mxu0 0.0
        %339 = vmatprep.subr.mxu0 0.0
        %340 = vmatpush1.msra.mxu0 0.0
        %341 = vmatprep.subr.mxu0 0.0
        %342 = vmatpush1.msra.mxu0 0.0
        %343 = vmatprep.subr.mxu0 0.0
        %344 = vmatpush1.msra.mxu0 0.0
        %345 = vmatprep.subr.mxu0 0.0
        %346 = vmatpush1.msra.mxu0 0.0
        %347 = vmatprep.subr.mxu0 0.0
        %348 = vmatpush1.msra.mxu0 0.0
        %349 = vmatprep.subr.mxu0 0.0
        %350 = vmatpush1.msra.mxu0 0.0
        %351 = vmatprep.subr.mxu0 0.0
        %352 = vmatpush1.msra.mxu0 0.0
        %353 = vmatprep.subr.mxu0 0.0
        %354 = vmatpush1.msra.mxu0 0.0
        %355 = vmatprep.subr.mxu0 0.0
        %356 = vmatpush1.msra.mxu0 0.0
        %357 = vmatprep.subr.mxu0 0.0
        %358 = vmatpush1.msra.mxu0 0.0
        %359 = vmatprep.subr.mxu0 0.0
        %360 = vmatpush1.msra.mxu0 0.0
        %361 = vmatprep.subr.mxu0 0.0
        %362 = vmatpush1.msra.mxu0 0.0
        %363 = vmatprep.subr.mxu0 0.0
        %364 = vmatpush1.msra.mxu0 0.0
        %365 = vmatprep.subr.mxu0 0.0
        %366 = vmatpush1.msra.mxu0 0.0
        %367 = vmatprep.mubr.f32.mxu0 0.0
        %368 = vmatmul.mubr.f32.gmra.mrb[0].mxu0 %v301
        %v369 = vpop.f32.mrb[0].mxu0
        %v370 = vadd.f32 %v297, %v369
        %v371 = vpop.f32.mrb[0].mxu0
        %v372 = vadd.f32 %v297, %v371
        %373 = vdwg.mxu0
        %v374 = vsub.f32 0.0, %v370
        %v375 = vsub.f32 0.0, %v372
        %v376 = vmul.f32 %v374, 1.442695
        %v377 = vpow.pop %v376
        %v378 = vmul.f32 %v375, 1.442695
        %v379 = vpow.pop %v378
        %v380 = vadd.f32 %v377, 1.0
        %v381 = vadd.f32 %v379, 1.0
        %v382 = vrcp.pop %v380
        %v383 = vrcp.pop %v381
        %v384 = vmul.f32 %v370, %v382
        %v385 = vmul.f32 %v372, %v383
        %v386 = vld [vmem:[%s5] sm:$0xff]
        %v387 = vld [vmem:[%s5 + $0x8] sm:$0xff]
        %v388 = vld [vmem:[%s5 + $0x10] sm:$0x1]
        %v389 = vld [vmem:[%s5 + $0x18] sm:$0x1]
        %390 = vrot.lane.b32.xlu0 %v384, 17
        %v391 = vpop.permute.xlu0 %390
        %392 = vrot.lane.b32.xlu0 %v385, 17
        %v393 = vpop.permute.xlu0 %392
        %v394 = vlaneseq
        %v395 = vand.u32 %v394, 127
        %vm396 = vcmp.lt.s32.totalorder %v395, 17
        %v397 = vsel %vm396, %v391, %v393
        %v398 = vsel %vm396, %v393, %v391
        %v399 = vlaneseq
        %v400 = vshrl.u32 %v399, 7
        %v401 = vsub.s32 0, %v400
        %v402 = vrot.slane %v386, %v401
        %v403 = vlaneseq
        %v404 = vshrl.u32 %v403, 7
        %v405 = vsub.s32 0, %v404
        %v406 = vrot.slane %v387, %v405
        %v407 = vmul.f32 %v398, %v402
        %v408 = vmul.f32 %v397, %v406
        %409 = vrot.lane.b32.xlu0 %v384, 16
        %v410 = vpop.permute.xlu0 %409
        %411 = vrot.lane.b32.xlu0 %v385, 16
        %v412 = vpop.permute.xlu0 %411
        %vm413 = vcmp.lt.s32.totalorder %v395, 16
        %v414 = vsel %vm413, %v410, %v412
        %v415 = vsel %vm413, %v412, %v410
        %v416 = vlaneseq
        %v417 = vshrl.u32 %v416, 7
        %v418 = vsub.s32 1, %v417
        %v419 = vrot.slane %v386, %v418
        %v420 = vlaneseq
        %v421 = vshrl.u32 %v420, 7
        %v422 = vsub.s32 1, %v421
        %v423 = vrot.slane %v387, %v422
        %v424 = vmul.f32 %v415, %v419
        %v425 = vmul.f32 %v414, %v423
        %426 = vrot.lane.b32.xlu0 %v384, 15
        %v427 = vpop.permute.xlu0 %426
        %428 = vrot.lane.b32.xlu0 %v385, 15
        %v429 = vpop.permute.xlu0 %428
        %vm430 = vcmp.lt.s32.totalorder %v395, 15
        %v431 = vsel %vm430, %v427, %v429
        %v432 = vsel %vm430, %v429, %v427
        %v433 = vlaneseq
        %v434 = vshrl.u32 %v433, 7
        %v435 = vsub.s32 2, %v434
        %v436 = vrot.slane %v386, %v435
        %v437 = vlaneseq
        %v438 = vshrl.u32 %v437, 7
        %v439 = vsub.s32 2, %v438
        %v440 = vrot.slane %v387, %v439
        %v441 = vmul.f32 %v432, %v436
        %v442 = vmul.f32 %v431, %v440
        %443 = vrot.lane.b32.xlu0 %v384, 1
        %v444 = vpop.permute.xlu0 %443
        %445 = vrot.lane.b32.xlu0 %v385, 1
        %v446 = vpop.permute.xlu0 %445
        %vm447 = vcmp.lt.s32.totalorder %v395, 1
        %v448 = vsel %vm447, %v444, %v446
        %v449 = vsel %vm447, %v446, %v444
        %v450 = vlaneseq
        %v451 = vshrl.u32 %v450, 7
        %v452 = vsub.s32 3, %v451
        %v453 = vrot.slane %v386, %v452
        %v454 = vlaneseq
        %v455 = vshrl.u32 %v454, 7
        %v456 = vsub.s32 3, %v455
        %v457 = vrot.slane %v387, %v456
        %v458 = vmul.f32 %v449, %v453
        %v459 = vmul.f32 %v448, %v457
        %460 = vrot.lane.b32.xlu0 %v384, 127
        %v461 = vpop.permute.xlu0 %460
        %462 = vrot.lane.b32.xlu0 %v385, 127
        %v463 = vpop.permute.xlu0 %462
        %vm464 = vcmp.lt.s32.totalorder %v395, 127
        %v465 = vsel %vm464, %v461, %v463
        %v466 = vsel %vm464, %v463, %v461
        %v467 = vlaneseq
        %v468 = vshrl.u32 %v467, 7
        %v469 = vsub.s32 5, %v468
        %v470 = vrot.slane %v386, %v469
        %v471 = vlaneseq
        %v472 = vshrl.u32 %v471, 7
        %v473 = vsub.s32 5, %v472
        %v474 = vrot.slane %v387, %v473
        %v475 = vmul.f32 %v465, %v470
        %v476 = vmul.f32 %v466, %v474
        %477 = vrot.lane.b32.xlu0 %v384, 113
        %v478 = vpop.permute.xlu0 %477
        %479 = vrot.lane.b32.xlu0 %v385, 113
        %v480 = vpop.permute.xlu0 %479
        %vm481 = vcmp.lt.s32.totalorder %v395, 113
        %v482 = vsel %vm481, %v478, %v480
        %v483 = vsel %vm481, %v480, %v478
        %v484 = vlaneseq
        %v485 = vshrl.u32 %v484, 7
        %v486 = vsub.s32 6, %v485
        %v487 = vrot.slane %v386, %v486
        %v488 = vlaneseq
        %v489 = vshrl.u32 %v488, 7
        %v490 = vsub.s32 6, %v489
        %v491 = vrot.slane %v387, %v490
        %v492 = vmul.f32 %v482, %v487
        %v493 = vmul.f32 %v483, %v491
        %494 = vrot.lane.b32.xlu0 %v384, 112
        %v495 = vpop.permute.xlu0 %494
        %496 = vrot.lane.b32.xlu0 %v385, 112
        %v497 = vpop.permute.xlu0 %496
        %vm498 = vcmp.lt.s32.totalorder %v395, 112
        %v499 = vsel %vm498, %v495, %v497
        %v500 = vsel %vm498, %v497, %v495
        %v501 = vlaneseq
        %v502 = vshrl.u32 %v501, 7
        %v503 = vsub.s32 7, %v502
        %v504 = vrot.slane %v386, %v503
        %v505 = vlaneseq
        %v506 = vshrl.u32 %v505, 7
        %v507 = vsub.s32 7, %v506
        %v508 = vrot.slane %v387, %v507
        %v509 = vmul.f32 %v499, %v504
        %v510 = vmul.f32 %v500, %v508
        %511 = vrot.lane.b32.xlu0 %v384, 111
        %v512 = vpop.permute.xlu0 %511
        %513 = vrot.lane.b32.xlu0 %v385, 111
        %v514 = vpop.permute.xlu0 %513
        %vm515 = vcmp.lt.s32.totalorder %v395, 111
        %v516 = vsel %vm515, %v512, %v514
        %v517 = vsel %vm515, %v514, %v512
        %v518 = vlaneseq
        %v519 = vshrl.u32 %v518, 7
        %v520 = vsub.s32 0, %v519
        %v521 = vrot.slane %v388, %v520
        %v522 = vlaneseq
        %v523 = vshrl.u32 %v522, 7
        %v524 = vsub.s32 0, %v523
        %v525 = vrot.slane %v389, %v524
        %v526 = vmul.f32 %v516, %v521
        %v527 = vmul.f32 %v517, %v525
        %v528 = vld [vmem:[#allocation5] sm:$0xff]
        %v529 = vld [vmem:[#allocation5 + $0x8] sm:$0xff]
        %v530 = vld [vmem:[%s4] sm:$0xff]
        %v531 = vld [vmem:[%s4 + $0x8] sm:$0xff]
        %533 = vset.pattern.permute.xlu0 0
        %534 = vperm.xlu0 %533, %v530
        %v535 = vpop.permute.xlu0 %534
        %538 = vset.pattern.permute.xlu0 0
        %539 = vperm.xlu0 %538, %v531
        %v540 = vpop.permute.xlu0 %539
        %vm542 = vcmask 588800
        %v544 = vsel %vm542, %v528, 0
        %v547 = vsel %vm542, %v529, 0
        %549 = vmatprep.subr.mxu0 %v408
        %550 = vmatpush1.msra.mxu0 %v407
        %551 = vmatprep.subr.mxu0 %v425
        %552 = vmatpush1.msra.mxu0 %v424
        %553 = vmatprep.subr.mxu0 %v442
        %554 = vmatpush1.msra.mxu0 %v441
        %555 = vmatprep.subr.mxu0 %v459
        %556 = vmatpush1.msra.mxu0 %v458
        %557 = vmatprep.subr.mxu0 %v385
        %558 = vmatpush1.msra.mxu0 %v384
        %559 = vmatprep.subr.mxu0 %v476
        %560 = vmatpush1.msra.mxu0 %v475
        %561 = vmatprep.subr.mxu0 %v493
        %562 = vmatpush1.msra.mxu0 %v492
        %563 = vmatprep.subr.mxu0 %v510
        %564 = vmatpush1.msra.mxu0 %v509
        %565 = vmatprep.subr.mxu0 %v527
        %566 = vmatpush1.msra.mxu0 %v526
        %567 = vmatprep.subr.mxu0 0.0
        %568 = vmatpush1.msra.mxu0 0.0
        %569 = vmatprep.subr.mxu0 0.0
        %570 = vmatpush1.msra.mxu0 0.0
        %571 = vmatprep.subr.mxu0 0.0
        %572 = vmatpush1.msra.mxu0 0.0
        %573 = vmatprep.subr.mxu0 0.0
        %574 = vmatpush1.msra.mxu0 0.0
        %575 = vmatprep.subr.mxu0 0.0
        %576 = vmatpush1.msra.mxu0 0.0
        %577 = vmatprep.subr.mxu0 0.0
        %578 = vmatpush1.msra.mxu0 0.0
        %579 = vmatprep.subr.mxu0 0.0
        %580 = vmatpush1.msra.mxu0 0.0
        %581 = vmatprep.subr.mxu0 0.0
        %582 = vmatpush1.msra.mxu0 0.0
        %583 = vmatprep.subr.mxu0 0.0
        %584 = vmatpush1.msra.mxu0 0.0
        %585 = vmatprep.subr.mxu0 0.0
        %586 = vmatpush1.msra.mxu0 0.0
        %587 = vmatprep.subr.mxu0 0.0
        %588 = vmatpush1.msra.mxu0 0.0
        %589 = vmatprep.subr.mxu0 0.0
        %590 = vmatpush1.msra.mxu0 0.0
        %591 = vmatprep.subr.mxu0 0.0
        %592 = vmatpush1.msra.mxu0 0.0
        %593 = vmatprep.subr.mxu0 0.0
        %594 = vmatpush1.msra.mxu0 0.0
        %595 = vmatprep.subr.mxu0 0.0
        %596 = vmatpush1.msra.mxu0 0.0
        %597 = vmatprep.subr.mxu0 0.0
        %598 = vmatpush1.msra.mxu0 0.0
        %599 = vmatprep.subr.mxu0 0.0
        %600 = vmatpush1.msra.mxu0 0.0
        %601 = vmatprep.subr.mxu0 0.0
        %602 = vmatpush1.msra.mxu0 0.0
        %603 = vmatprep.subr.mxu0 0.0
        %604 = vmatpush1.msra.mxu0 0.0
        %605 = vmatprep.subr.mxu0 0.0
        %606 = vmatpush1.msra.mxu0 0.0
        %607 = vmatprep.subr.mxu0 0.0
        %608 = vmatpush1.msra.mxu0 0.0
        %609 = vmatprep.subr.mxu0 0.0
        %610 = vmatpush1.msra.mxu0 0.0
        %611 = vmatprep.subr.mxu0 0.0
        %612 = vmatpush1.msra.mxu0 0.0
        %613 = vmatprep.mubr.f32.mxu0 0.0
        %614 = vmatmul.mubr.f32.gmra.mrb[0].mxu0 %v544
        %v615 = vpop.f32.mrb[0].mxu0
        %v616 = vadd.f32 %v535, %v615
        %v617 = vpop.f32.mrb[0].mxu0
        %v618 = vadd.f32 %v535, %v617
        %619 = vmatprep.mubr.f32.mxu0 0.0
        %620 = vmatmul.mubr.f32.gmra.mrb[0].mxu0 %v547
        %v621 = vpop.f32.mrb[0].mxu0
        %v622 = vadd.f32 %v540, %v621
        %v623 = vpop.f32.mrb[0].mxu0
        %v624 = vadd.f32 %v540, %v623
        %625 = vdwg.mxu0
        %v626 = vsub.f32 0.0, %v616
        %v627 = vsub.f32 0.0, %v618
        %v628 = vsub.f32 0.0, %v622
        %v629 = vsub.f32 0.0, %v624
        %v630 = vmul.f32 %v626, 1.442695
        %v631 = vpow.pop %v630
        %v632 = vmul.f32 %v627, 1.442695
        %v633 = vpow.pop %v632
        %v634 = vmul.f32 %v628, 1.442695
        %v635 = vpow.pop %v634
        %v636 = vmul.f32 %v629, 1.442695
        %v637 = vpow.pop %v636
        %v638 = vadd.f32 %v631, 1.0
        %v639 = vadd.f32 %v633, 1.0
        %v640 = vadd.f32 %v635, 1.0
        %v641 = vadd.f32 %v637, 1.0
        %v642 = vrcp.pop %v638
        %v643 = vrcp.pop %v639
        %v644 = vrcp.pop %v640
        %v645 = vrcp.pop %v641
        %v646 = vmul.f32 %v616, %v642
        %v647 = vmul.f32 %v618, %v643
        %v648 = vmul.f32 %v622, %v644
        %v649 = vmul.f32 %v624, %v645
        %v650 = vadd.f32 %v646, %v288
        %v651 = vadd.f32 %v647, %v289
        %v652 = vadd.f32 %v648, %v290
        %v653 = vadd.f32 %v649, %v291
        %654 = vst [vmem:[%s285] sm:$0xff] %v650
        %655 = vst [vmem:[%s285 + $0x8] sm:$0xff] %v651
        %656 = vst [vmem:[%s285 + $0x10] sm:$0xff] %v652
        %657 = vst [vmem:[%s285 + $0x18] sm:$0xff] %v653
        %s658 = sand.u32 %s163, 1
        %s659 = scalar_lea.sflag [#allocation4], %s658
        %s660 = sand.u32 %s163, 1
        %s661 = smul.addr %s660, 32
        %s662 = scalar_lea.vmem [#allocation7], %s661
        // Predicated region
        $region53: #{tpu_custom_call.1} parent=43 // pred_check
          %p663 = pneg %p173
        $region54: #{tpu_custom_call.1} parent=43 // pred_check_branch
          %665 = sbr.rel (%p663) target = $region56
        $region55: #{tpu_custom_call.1} parent=43 // pred_region
          %s666 = smul.u32 2, %s24
          %s668 = ssub.s32 512, 512
          %669 = vsyncadd %s659, %s668
          %s670 = smul.addr %s666, 2
          %s671 = smul.addr %s670, 128
          %s672 = scalar_lea.hbm %s6, %s671
          %s673 = sshll.u32 %s662, 4
          %s674 = int_to_ptr.vmem [resolvable:$true] %s673
          %679 = dma.vmem_to_hbm [thread:$0]  %s674, 512, %s672, %s659, 256, 256, 16
        $region56: #{tpu_custom_call.1} parent=43 // pred_fallthru
          _
      $region44: #{tpu_custom_call.1} parent=5 // pred_fallthru
        _
      %p680 = scmp.le.s32.totalorder 2, %s19
      // Predicated region
      $region57: #{tpu_custom_call.1} parent=5 // pred_check
        %p681 = pneg %p680
      $region58: #{tpu_custom_call.1} parent=5 // pred_check_branch
        %683 = sbr.rel (%p681) target = $region60
      $region59: #{tpu_custom_call.1} parent=5 // pred_region
        %s684 = ssub.s32 %s19, 2
        // Predicated region
        $region61: #{tpu_custom_call.1} parent=59 // pred_check
          %p685 = pneg %p179
        $region62: #{tpu_custom_call.1} parent=59 // pred_check_branch
          %687 = sbr.rel (%p685) target = $region64
        $region63: #{tpu_custom_call.1} parent=59 // pred_region
          %s688 = sand.u32 %s164, 1
          %s689 = scalar_lea.sflag [#allocation4], %s688
          %s690 = sand.u32 %s164, 1
          %s691 = smul.addr %s690, 32
          %s692 = scalar_lea.vmem [#allocation7], %s691
          %693 = dma.done %s689, 512
        $region64: #{tpu_custom_call.1} parent=59 // pred_fallthru
          _
      $region60: #{tpu_custom_call.1} parent=5 // pred_fallthru
        _
    $region6: #{tpu_custom_call.1} parent=1 // loop_footer
      %s23 = sadd.s32 1, %s19
    $region7: #{tpu_custom_call.1} parent=1 // loop_footer_branch
      %18 = sbr.rel target = $region3
    $region8: #{tpu_custom_call.1} parent=1 // loop_exit
      _
    %694 = vsyncpa [#allocation3], 1
    %s695 = scalar_lea.sflag [#allocation3], 1
    %696 = vsyncpa %s695, 1
    %697 = vsyncpa [#allocation6], 1
    %698 = vsyncpa [#allocation4], 1
    %s699 = scalar_lea.sflag [#allocation4], 1
    %700 = vsyncpa %s699, 1

</llo_original>
